<compile_context>
chip_gen: v5e
topology: v5e:2x2
jax: 0.10.0
libtpu: 0.0.40
codegen_flags: <defaults>
</compile_context>

<pallas_src>
import functools

import jax
import jax.numpy as jnp
from jax.experimental import pallas as pl
from jax.experimental.pallas import tpu as pltpu

ALPHA = 0.5          # Resonance-loss weight (0 <= alpha <= 1)
GAMMA = 0.1          # Curvature weight (unused in forward, kept for parity)
EPS = 1e-8           # PyTorch F.cosine_similarity default eps
MIN_KERNEL_H = 128   # below this hidden size, use the plain-JAX path
_MIB = 1024 * 1024


# ----------------------------------------------------------------------------
# Generation-aware sizing helpers
# ----------------------------------------------------------------------------
def _vmem_capacity_bytes(default_bytes=64 * _MIB):
    """Physical VMEM capacity; conservative (v7x-sized) default if unknown."""
    try:
        info = pltpu.get_tpu_info()
        for attr in ("vmem_capacity_bytes", "vmem_bytes", "vmem_size_bytes"):
            v = getattr(info, attr, None)
            if v:
                return int(v)
    except Exception:
        pass
    return default_bytes


def _generation_budgets():
    """Returns (target_block_bytes, temp_budget_bytes, vmem_limit_bytes)."""
    vmem = _vmem_capacity_bytes()
    if vmem >= 100 * _MIB:
        # v5e / v6e: 128 MiB physical VMEM -> bigger blocks amortize the
        # ~0.35 us/step grid overhead against the HBM roofline.
        return 4 * _MIB, 8 * _MIB, 64 * _MIB
    # v7x (64 MiB physical) or unknown: cap block size and scoped VMEM so
    # 2 inputs x 2 pipeline buffers + f32 chunk temporaries never overrun.
    return 2 * _MIB, 6 * _MIB, 48 * _MIB


def _pick_chunk(h):
    """128-aligned H-chunk width for the in-kernel reduction."""
    if h <= 512:
        return h
    chunk = None
    for c in (512, 256, 128):
        if h % c == 0:
            chunk = c
            break
    if chunk is None:
        return h                       # odd H: single full-width chunk
    # Avoid excessive unrolling for very wide hidden dims.
    while h // chunk > 16 and h % (chunk * 2) == 0:
        chunk *= 2
    return chunk


# ----------------------------------------------------------------------------
# Kernel
# ----------------------------------------------------------------------------
def _cosine_partial_kernel(flow_ref, tgt_ref, out_ref, *, chunk):
    """Per-tile partial sum of row-wise cosine similarities.

    flow_ref / tgt_ref : VMEM (TILE_N, H) tiles, input's native dtype.
    out_ref            : VMEM (8, 128) f32 block, broadcast-filled with this
                         tile's partial sum (lane-dense full-block store).
    """
    tile_n, h = flow_ref.shape
    n_chunks = h // chunk              # chunk divides h by construction

    dot = jnp.zeros((tile_n, 1), jnp.float32)
    nx2 = jnp.zeros((tile_n, 1), jnp.float32)
    ny2 = jnp.zeros((tile_n, 1), jnp.float32)

    # Static (unrolled) loop over 128-aligned H chunks: caps f32 temporaries
    # at O(tile_n * chunk) and keeps VALU pressure bounded on v7x bf16 streams.
    for c in range(n_chunks):
        lo, hi = c * chunk, (c + 1) * chunk
        x = flow_ref[:, lo:hi].astype(jnp.float32)
        y = tgt_ref[:, lo:hi].astype(jnp.float32)
        dot = dot + jnp.sum(x * y, axis=-1, keepdims=True)
        nx2 = nx2 + jnp.sum(x * x, axis=-1, keepdims=True)
        ny2 = ny2 + jnp.sum(y * y, axis=-1, keepdims=True)

    # ATen cosine_similarity: w12 / sqrt(clamp_min(w1*w2, eps^2)) -> one rsqrt.
    inv = jax.lax.rsqrt(jnp.maximum(nx2 * ny2, jnp.float32(EPS * EPS)))
    partial = jnp.sum(dot * inv, keepdims=True)          # (1, 1)
    out_ref[...] = jnp.broadcast_to(partial, out_ref.shape)


def _resonance_sum_pallas(flow2d, tgt2d, *, tile_n=None):
    """sum_i cosine_similarity(flow2d[i], tgt2d[i]) via a streaming Pallas kernel."""
    n, h = flow2d.shape
    itemsize = jnp.dtype(flow2d.dtype).itemsize
    target_block_bytes, temp_budget, vmem_limit = _generation_budgets()
    chunk = _pick_chunk(h)

    # --- Tile sizing: bounded by (a) target input-block bytes and (b) the
    #     f32 chunk-temporary budget (~4 temps x 4 bytes per chunk element).
    if tile_n is None:
        by_io = max(1, target_block_bytes // (h * itemsize))
        by_tmp = max(1, temp_budget // (16 * chunk))
        tile_n = min(by_io, by_tmp)
    tile_n = max(8, (int(tile_n) // 8) * 8)
    tile_n = min(tile_n, int(pl.cdiv(n, 8)) * 8)
    tile_n = max(8, tile_n)

    steps = int(pl.cdiv(n, tile_n))
    pad = steps * tile_n - n
    if pad:
        # Zero rows contribute cos = 0 (denominator clamps to eps); the caller
        # divides by the ORIGINAL row count.
        flow2d = jnp.pad(flow2d, ((0, pad), (0, 0)))
        tgt2d = jnp.pad(tgt2d, ((0, pad), (0, 0)))

    kernel = functools.partial(_cosine_partial_kernel, chunk=chunk)
    cost = pl.CostEstimate(
        flops=8 * n * h,
        transcendentals=n,
        bytes_accessed=2 * steps * tile_n * h * itemsize + steps * 8 * 128 * 4,
    )

    partials = pl.pallas_call(
        kernel,
        out_shape=jax.ShapeDtypeStruct((steps * 8, 128), jnp.float32),
        grid_spec=pltpu.PrefetchScalarGridSpec(
            num_scalar_prefetch=0,
            grid=(steps,),
            in_specs=[
                pl.BlockSpec((tile_n, h), lambda s: (s, 0)),   # flow tile
                pl.BlockSpec((tile_n, h), lambda s: (s, 0)),   # target tile
            ],
            out_specs=pl.BlockSpec((8, 128), lambda s: (s, 0)),
        ),
        compiler_params=pltpu.CompilerParams(
            # Independent row tiles: lets v7x's 2 TensorCores split the grid;
            # harmless (sequential) on single-TC v5e/v6e.
            dimension_semantics=("parallel",),
            vmem_limit_bytes=vmem_limit,
        ),
        cost_estimate=cost,
    )(flow2d, tgt2d)

    # Each (8, 128) block is filled with its tile's partial sum: take one value
    # per block and pairwise-sum outside (better numerics than serial scalar).
    return jnp.sum(partials[0::8, 0])


def _resonance_sum_ref(flow2d, tgt2d):
    """Plain-JAX sum of row cosine similarities (fallback path / reference)."""
    x = flow2d.astype(jnp.float32)
    y = tgt2d.astype(jnp.float32)
    dot = jnp.sum(x * y, axis=-1)
    nx2 = jnp.sum(x * x, axis=-1)
    ny2 = jnp.sum(y * y, axis=-1)
    return jnp.sum(dot / jnp.sqrt(jnp.maximum(nx2 * ny2, jnp.float32(EPS * EPS))))


# ----------------------------------------------------------------------------
# Public forward
# ----------------------------------------------------------------------------
def geometric_loss(main_loss, flow_vectors=None, target_vectors=None, *,
                   alpha=ALPHA, gamma=GAMMA, tile_n=None):
    """Pallas implementation of GeometricLoss.forward.

    main_loss      : scalar
    flow_vectors   : (..., H)  -- last element of model_outputs['hidden_states']
    target_vectors : (..., H)
    Returns a float32 scalar.
    """
    if not 0.0 <= alpha <= 1.0:
        raise ValueError(f"alpha must be in [0, 1], got {alpha}")
    if not gamma >= 0.0:
        raise ValueError(f"gamma must be >= 0, got {gamma}")

    main_f32 = jnp.asarray(main_loss, jnp.float32)
    if alpha <= 0.0 or flow_vectors is None or target_vectors is None:
        return main_f32

    H = flow_vectors.shape[-1]
    flow2d = flow_vectors.reshape(-1, H)      # native dtype streams through
    tgt2d = target_vectors.reshape(-1, H)
    N = flow2d.shape[0]
    if N == 0:
        return main_f32

    if H < MIN_KERNEL_H:
        # Tiny hidden dims waste 128-wide lanes and become XLU-bound in a
        # kernel; plain XLA is as fast and semantics are identical.
        sum_cos = _resonance_sum_ref(flow2d, tgt2d)
    else:
        sum_cos = _resonance_sum_pallas(flow2d, tgt2d, tile_n=tile_n)

    resonance_loss = -(sum_cos / jnp.float32(N))
    return main_f32 + jnp.float32(alpha) * resonance_loss


def geometric_loss_ref(main_loss, flow_vectors, target_vectors, alpha=ALPHA):
    """Pure-JAX reference mirroring the PyTorch forward."""
    H = flow_vectors.shape[-1]
    f2d = flow_vectors.reshape(-1, H)
    t2d = target_vectors.reshape(-1, H)
    n = f2d.shape[0]
    resonance = -(_resonance_sum_ref(f2d, t2d) / jnp.float32(n))
    return jnp.asarray(main_loss, jnp.float32) + jnp.float32(alpha) * resonance


# ----------------------------------------------------------------------------
# Self-test
# ----------------------------------------------------------------------------
if __name__ == "__main__":
    key = jax.random.PRNGKey(0)
    k1, k2, k3, k4, k5 = jax.random.split(key, 5)
    main_loss = jnp.float32(1.25)

    # Case 1: kernel path.  batch=2, seq=64, hidden=256 (f32, single tile).
    B, S, Hd = 2, 64, 256
    hidden_states = [
        jax.random.normal(k1, (B, S, Hd), dtype=jnp.float32),
        jax.random.normal(k2, (B, S, Hd), dtype=jnp.float32),   # flow = last state
    ]
    model_outputs = {"hidden_states": hidden_states}
    target_vectors = jax.random.normal(k3, (B, S, Hd), dtype=jnp.float32)
    flow_vectors = model_outputs["hidden_states"][-1]

    out = jax.block_until_ready(geometric_loss(main_loss, flow_vectors, target_vectors))
    ref = geometric_loss_ref(main_loss, flow_vectors, target_vectors)
    assert jnp.allclose(out, ref, atol=1e-5, rtol=1e-5), (out, ref)

    # Case 2: bf16 streaming, multi-tile grid, tail padding and H-chunking
    # (H=1024 -> two 512-wide chunks; N=100 rows with tile_n=32 -> 4 steps).
    flow_odd = jax.random.normal(k4, (100, 1024), dtype=jnp.bfloat16)
    tgt_odd = jax.random.normal(k5, (100, 1024), dtype=jnp.bfloat16)
    out2 = jax.block_until_ready(
        geometric_loss(main_loss, flow_odd, tgt_odd, tile_n=32))
    ref2 = geometric_loss_ref(main_loss, flow_odd, tgt_odd)
    assert jnp.allclose(out2, ref2, atol=1e-4, rtol=1e-4), (out2, ref2)

    # Case 3: small hidden dim (batch=2, seq=8, hidden=32) -> documented JAX fallback.
    flow_small = jax.random.normal(k1, (2, 8, 32), dtype=jnp.float32)
    tgt_small = jax.random.normal(k2, (2, 8, 32), dtype=jnp.float32)
    out3 = jax.block_until_ready(geometric_loss(main_loss, flow_small, tgt_small))
    ref3 = geometric_loss_ref(main_loss, flow_small, tgt_small)
    assert jnp.allclose(out3, ref3, atol=1e-5, rtol=1e-5), (out3, ref3)

    # Case 4: alpha = 0 short-circuit (forward returns main_loss unchanged).
    out4 = jax.block_until_ready(
        geometric_loss(main_loss, flow_vectors, target_vectors, alpha=0.0))
    assert jnp.allclose(out4, main_loss), (out4, main_loss)

    print("KERNEL_OK")
</pallas_src>

<mosaic_0001>
module attributes {stable_mosaic.version = 11 : i64} {
  func.func @_cosine_partial_kernel(%arg0: i32, %arg1: memref<128x256xf32, #tpu.memory_space<vmem>>, %arg2: memref<128x256xf32, #tpu.memory_space<vmem>>, %arg3: memref<8x128xf32, #tpu.memory_space<vmem>>) attributes {dimension_semantics = [#tpu.dimension_semantics<parallel>], iteration_bounds = array<i64: 1>, scalar_prefetch = 0 : i64, scratch_operands = 0 : i64, tpu.core_type = #tpu.core_type<tc>, window_params = [{transform_indices = @transform_0, window_bounds = array<i64: 128, 256>}, {transform_indices = @transform_1, window_bounds = array<i64: 128, 256>}, {transform_indices = @transform_2, window_bounds = array<i64: 8, 128>}]} {
    %cst = arith.constant 0.000000e+00 : f32
    %0 = vector.broadcast %cst : f32 to vector<128x1xf32>
    %cst_0 = arith.constant 0.000000e+00 : f32
    %1 = vector.broadcast %cst_0 : f32 to vector<128x1xf32>
    %cst_1 = arith.constant 0.000000e+00 : f32
    %2 = vector.broadcast %cst_1 : f32 to vector<128x1xf32>
    %c0 = arith.constant 0 : index
    %c0_2 = arith.constant 0 : index
    %3 = vector.load %arg1[%c0, %c0_2] : memref<128x256xf32, #tpu.memory_space<vmem>>, vector<128x256xf32>
    %c0_3 = arith.constant 0 : index
    %c0_4 = arith.constant 0 : index
    %4 = vector.load %arg2[%c0_3, %c0_4] : memref<128x256xf32, #tpu.memory_space<vmem>>, vector<128x256xf32>
    %5 = arith.mulf %3, %4 : vector<128x256xf32>
    %cst_5 = arith.constant dense<0.000000e+00> : vector<128xf32>
    %6 = vector.multi_reduction <add>, %5, %cst_5 [1] : vector<128x256xf32> to vector<128xf32>
    %7 = vector.shape_cast %6 : vector<128xf32> to vector<128x1xf32>
    %8 = arith.addf %0, %7 : vector<128x1xf32>
    %9 = arith.mulf %3, %3 : vector<128x256xf32>
    %cst_6 = arith.constant dense<0.000000e+00> : vector<128xf32>
    %10 = vector.multi_reduction <add>, %9, %cst_6 [1] : vector<128x256xf32> to vector<128xf32>
    %11 = vector.shape_cast %10 : vector<128xf32> to vector<128x1xf32>
    %12 = arith.addf %1, %11 : vector<128x1xf32>
    %13 = arith.mulf %4, %4 : vector<128x256xf32>
    %cst_7 = arith.constant dense<0.000000e+00> : vector<128xf32>
    %14 = vector.multi_reduction <add>, %13, %cst_7 [1] : vector<128x256xf32> to vector<128xf32>
    %15 = vector.shape_cast %14 : vector<128xf32> to vector<128x1xf32>
    %16 = arith.addf %2, %15 : vector<128x1xf32>
    %17 = arith.mulf %12, %16 : vector<128x1xf32>
    %cst_8 = arith.constant 1.000000e-16 : f32
    %18 = vector.broadcast %cst_8 : f32 to vector<128x1xf32>
    %19 = arith.maximumf %17, %18 : vector<128x1xf32>
    %20 = math.rsqrt %19 : vector<128x1xf32>
    %21 = arith.mulf %8, %20 : vector<128x1xf32>
    %22 = vector.shape_cast %21 : vector<128x1xf32> to vector<1x128x1xf32>
    %cst_9 = arith.constant dense<0.000000e+00> : vector<1xf32>
    %23 = vector.multi_reduction <add>, %22, %cst_9 [1, 2] : vector<1x128x1xf32> to vector<1xf32>
    %24 = vector.shape_cast %23 : vector<1xf32> to vector<1x1x1xf32>
    %25 = vector.extract %24[0, 0, 0] : f32 from vector<1x1x1xf32>
    %26 = vector.broadcast %25 : f32 to vector<1x1xf32>
    %27 = vector.shape_cast %26 : vector<1x1xf32> to vector<1x1xf32>
    %28 = vector.broadcast %27 : vector<1x1xf32> to vector<8x128xf32>
    %c0_10 = arith.constant 0 : index
    %c0_11 = arith.constant 0 : index
    %29 = vector.load %arg3[%c0_10, %c0_11] : memref<8x128xf32, #tpu.memory_space<vmem>>, vector<8x128xf32>
    tpu.vector_store %arg3[%c0_10, %c0_11], %28 {strides = array<i32>} : memref<8x128xf32, #tpu.memory_space<vmem>>, vector<8x128xf32>,
    return
  }
  func.func @transform_0(%arg0: i32) -> (i32, i32) {
    %c0_i32 = arith.constant 0 : i32
    %c0_i32_0 = arith.constant 0 : i32
    return %arg0, %c0_i32 : i32, i32
  }
  func.func @transform_1(%arg0: i32) -> (i32, i32) {
    %c0_i32 = arith.constant 0 : i32
    %c0_i32_0 = arith.constant 0 : i32
    return %arg0, %c0_i32 : i32, i32
  }
  func.func @transform_2(%arg0: i32) -> (i32, i32) {
    %c0_i32 = arith.constant 0 : i32
    %c0_i32_0 = arith.constant 0 : i32
    return %arg0, %c0_i32 : i32, i32
  }
}

</mosaic_0001>

<llo_original>
// kernel: tpu_custom_call.1
$region0: #{tpu_custom_call.1}
  #allocation0 [shape = 'u32[]', space=smem, size = 0x4, offset = 0x4, fixed_abs, tag = 'smem constant byte address 0x4 - core index']
  #allocation1 [shape = 'u32[72,128]{1,0:T(1,128)}', space=vmem, size = 0x9000, scoped, tag = 'internal scratch']
  %s0 = inlined_call_operand.hbm [shape: f32[128,256], index: 0, kind: input, shape index: {}]
  %s1 = inlined_call_operand.hbm [shape: f32[128,256], index: 1, kind: input, shape index: {}]
  %s2 = inlined_call_operand.hbm [shape: f32[8,128], index: 2, kind: output, shape index: {}]
  %s3 = sld [smem:[#allocation0]]
  $region26: #{tpu_custom_call.1} parent=0
    _
  %s5 = ssub.s32 1, %s3
  %s6 = scalar_select 0, %s5, %s3
  $region1: #{tpu_custom_call.1} parent=0
    #allocation2 [shape = 'u8[131072]{0}', space=vmem, size = 0x20000, scoped, tag = 'input window, operand 0, single buffered']
    #allocation3 [shape = 's32[1]{0}', space=sflag, size = 0x4, scoped, tag = 'scoped memory for tpu_custom_call.1']
    #allocation4 [shape = 's32[1]{0}', space=sflag, size = 0x4, scoped, tag = 'scoped memory for tpu_custom_call.1']
    #allocation5 [shape = 'u8[131072]{0}', space=vmem, size = 0x20000, scoped, tag = 'input window, operand 1, single buffered']
    #allocation6 [shape = 's32[1]{0}', space=sflag, size = 0x4, scoped, tag = 'scoped memory for tpu_custom_call.1']
    #allocation7 [shape = 'u8[4096]{0}', space=vmem, size = 0x1000, scoped, tag = 'output window, operand 0, single buffered']
    %7 = vsyncpa [#allocation3], 0
    %8 = vsyncpa [#allocation6], 0
    %9 = vsyncpa [#allocation4], 0
    // Predicated region
    $region2: #{tpu_custom_call.1} parent=1 // pred_check
      _
    $region3: #{tpu_custom_call.1} parent=1 // pred_check_branch
      %11 = sbr.rel (0) target = $region5
    $region4: #{tpu_custom_call.1} parent=1 // pred_region
      %13 = vsyncadd [#allocation3], 0
      %s14 = sshll.u32 %s0, 4
      %s15 = int_to_ptr.hbm [resolvable:$true] %s14
      %s16 = sshll.u32 [#allocation2], 4
      %s17 = int_to_ptr.vmem [resolvable:$true] %s16
      %22 = dma.hbm_to_vmem [thread:$0]  %s15, 4096, %s17, [#allocation3], 256, 256, 16
    $region5: #{tpu_custom_call.1} parent=1 // pred_fallthru
      _
    // Predicated region
    $region6: #{tpu_custom_call.1} parent=1 // pred_check
      _
    $region7: #{tpu_custom_call.1} parent=1 // pred_check_branch
      %24 = sbr.rel (0) target = $region9
    $region8: #{tpu_custom_call.1} parent=1 // pred_region
      %26 = vsyncadd [#allocation6], 0
      %s27 = sshll.u32 %s1, 4
      %s28 = int_to_ptr.hbm [resolvable:$true] %s27
      %s29 = sshll.u32 [#allocation5], 4
      %s30 = int_to_ptr.vmem [resolvable:$true] %s29
      %35 = dma.hbm_to_vmem [thread:$0]  %s28, 4096, %s30, [#allocation6], 256, 256, 16
    $region9: #{tpu_custom_call.1} parent=1 // pred_fallthru
      _
    // Predicated region
    $region10: #{tpu_custom_call.1} parent=1 // pred_check
      _
    $region11: #{tpu_custom_call.1} parent=1 // pred_check_branch
      %37 = sbr.rel (0) target = $region13
    $region12: #{tpu_custom_call.1} parent=1 // pred_region
      %39 = dma.done [#allocation3], 4096
    $region13: #{tpu_custom_call.1} parent=1 // pred_fallthru
      _
    // Predicated region
    $region14: #{tpu_custom_call.1} parent=1 // pred_check
      _
    $region15: #{tpu_custom_call.1} parent=1 // pred_check_branch
      %41 = sbr.rel (0) target = $region17
    $region16: #{tpu_custom_call.1} parent=1 // pred_region
      %43 = dma.done [#allocation6], 4096
    $region17: #{tpu_custom_call.1} parent=1 // pred_fallthru
      _
    %v44 = vld [vmem:[#allocation2] sm:$0xff]
    %v45 = vld [vmem:[#allocation2 + $0x8] sm:$0xff]
    %v46 = vld [vmem:[#allocation2 + $0x10] sm:$0xff]
    %v47 = vld [vmem:[#allocation2 + $0x18] sm:$0xff]
    %v48 = vld [vmem:[#allocation2 + $0x20] sm:$0xff]
    %v49 = vld [vmem:[#allocation2 + $0x28] sm:$0xff]
    %v50 = vld [vmem:[#allocation2 + $0x30] sm:$0xff]
    %v51 = vld [vmem:[#allocation2 + $0x38] sm:$0xff]
    %v52 = vld [vmem:[#allocation2 + $0x40] sm:$0xff]
    %v53 = vld [vmem:[#allocation2 + $0x48] sm:$0xff]
    %v54 = vld [vmem:[#allocation2 + $0x50] sm:$0xff]
    %v55 = vld [vmem:[#allocation2 + $0x58] sm:$0xff]
    %v56 = vld [vmem:[#allocation2 + $0x60] sm:$0xff]
    %v57 = vld [vmem:[#allocation2 + $0x68] sm:$0xff]
    %v58 = vld [vmem:[#allocation2 + $0x70] sm:$0xff]
    %v59 = vld [vmem:[#allocation2 + $0x78] sm:$0xff]
    %v60 = vld [vmem:[#allocation2 + $0x80] sm:$0xff]
    %v61 = vld [vmem:[#allocation2 + $0x88] sm:$0xff]
    %v62 = vld [vmem:[#allocation2 + $0x90] sm:$0xff]
    %v63 = vld [vmem:[#allocation2 + $0x98] sm:$0xff]
    %v64 = vld [vmem:[#allocation2 + $0xa0] sm:$0xff]
    %v65 = vld [vmem:[#allocation2 + $0xa8] sm:$0xff]
    %v66 = vld [vmem:[#allocation2 + $0xb0] sm:$0xff]
    %v67 = vld [vmem:[#allocation2 + $0xb8] sm:$0xff]
    %v68 = vld [vmem:[#allocation2 + $0xc0] sm:$0xff]
    %v69 = vld [vmem:[#allocation2 + $0xc8] sm:$0xff]
    %v70 = vld [vmem:[#allocation2 + $0xd0] sm:$0xff]
    %v71 = vld [vmem:[#allocation2 + $0xd8] sm:$0xff]
    %v72 = vld [vmem:[#allocation2 + $0xe0] sm:$0xff]
    %v73 = vld [vmem:[#allocation2 + $0xe8] sm:$0xff]
    %v74 = vld [vmem:[#allocation2 + $0xf0] sm:$0xff]
    %v75 = vld [vmem:[#allocation2 + $0xf8] sm:$0xff]
    %v76 = vld [vmem:[#allocation5] sm:$0xff]
    %v77 = vld [vmem:[#allocation5 + $0x8] sm:$0xff]
    %v78 = vld [vmem:[#allocation5 + $0x10] sm:$0xff]
    %v79 = vld [vmem:[#allocation5 + $0x18] sm:$0xff]
    %v80 = vld [vmem:[#allocation5 + $0x20] sm:$0xff]
    %v81 = vld [vmem:[#allocation5 + $0x28] sm:$0xff]
    %v82 = vld [vmem:[#allocation5 + $0x30] sm:$0xff]
    %v83 = vld [vmem:[#allocation5 + $0x38] sm:$0xff]
    %v84 = vld [vmem:[#allocation5 + $0x40] sm:$0xff]
    %v85 = vld [vmem:[#allocation5 + $0x48] sm:$0xff]
    %v86 = vld [vmem:[#allocation5 + $0x50] sm:$0xff]
    %v87 = vld [vmem:[#allocation5 + $0x58] sm:$0xff]
    %v88 = vld [vmem:[#allocation5 + $0x60] sm:$0xff]
    %v89 = vld [vmem:[#allocation5 + $0x68] sm:$0xff]
    %v90 = vld [vmem:[#allocation5 + $0x70] sm:$0xff]
    %v91 = vld [vmem:[#allocation5 + $0x78] sm:$0xff]
    %v92 = vld [vmem:[#allocation5 + $0x80] sm:$0xff]
    %v93 = vld [vmem:[#allocation5 + $0x88] sm:$0xff]
    %v94 = vld [vmem:[#allocation5 + $0x90] sm:$0xff]
    %v95 = vld [vmem:[#allocation5 + $0x98] sm:$0xff]
    %v96 = vld [vmem:[#allocation5 + $0xa0] sm:$0xff]
    %v97 = vld [vmem:[#allocation5 + $0xa8] sm:$0xff]
    %v98 = vld [vmem:[#allocation5 + $0xb0] sm:$0xff]
    %v99 = vld [vmem:[#allocation5 + $0xb8] sm:$0xff]
    %v100 = vld [vmem:[#allocation5 + $0xc0] sm:$0xff]
    %v101 = vld [vmem:[#allocation5 + $0xc8] sm:$0xff]
    %v102 = vld [vmem:[#allocation5 + $0xd0] sm:$0xff]
    %v103 = vld [vmem:[#allocation5 + $0xd8] sm:$0xff]
    %v104 = vld [vmem:[#allocation5 + $0xe0] sm:$0xff]
    %v105 = vld [vmem:[#allocation5 + $0xe8] sm:$0xff]
    %v106 = vld [vmem:[#allocation5 + $0xf0] sm:$0xff]
    %v107 = vld [vmem:[#allocation5 + $0xf8] sm:$0xff]
    %v108 = vmul.f32 %v44, %v76
    %v109 = vmul.f32 %v45, %v77
    %v110 = vmul.f32 %v46, %v78
    %v111 = vmul.f32 %v47, %v79
    %v112 = vmul.f32 %v48, %v80
    %v113 = vmul.f32 %v49, %v81
    %v114 = vmul.f32 %v50, %v82
    %v115 = vmul.f32 %v51, %v83
    %v116 = vmul.f32 %v52, %v84
    %v117 = vmul.f32 %v53, %v85
    %v118 = vmul.f32 %v54, %v86
    %v119 = vmul.f32 %v55, %v87
    %v120 = vmul.f32 %v56, %v88
    %v121 = vmul.f32 %v57, %v89
    %v122 = vmul.f32 %v58, %v90
    %v123 = vmul.f32 %v59, %v91
    %v124 = vmul.f32 %v60, %v92
    %v125 = vmul.f32 %v61, %v93
    %v126 = vmul.f32 %v62, %v94
    %v127 = vmul.f32 %v63, %v95
    %v128 = vmul.f32 %v64, %v96
    %v129 = vmul.f32 %v65, %v97
    %v130 = vmul.f32 %v66, %v98
    %v131 = vmul.f32 %v67, %v99
    %v132 = vmul.f32 %v68, %v100
    %v133 = vmul.f32 %v69, %v101
    %v134 = vmul.f32 %v70, %v102
    %v135 = vmul.f32 %v71, %v103
    %v136 = vmul.f32 %v72, %v104
    %v137 = vmul.f32 %v73, %v105
    %v138 = vmul.f32 %v74, %v106
    %v139 = vmul.f32 %v75, %v107
    %v140 = vadd.f32 %v108, %v109
    %141 = vadd.xlane.f32.xlu0 %v140
    %v142 = vpop.xlane.xlu0 %141
    %v143 = vadd.f32 %v110, %v111
    %144 = vadd.xlane.f32.xlu0 %v143
    %v145 = vpop.xlane.xlu0 %144
    %v146 = vadd.f32 %v112, %v113
    %147 = vadd.xlane.f32.xlu0 %v146
    %v148 = vpop.xlane.xlu0 %147
    %v149 = vadd.f32 %v114, %v115
    %150 = vadd.xlane.f32.xlu0 %v149
    %v151 = vpop.xlane.xlu0 %150
    %v152 = vadd.f32 %v116, %v117
    %153 = vadd.xlane.f32.xlu0 %v152
    %v154 = vpop.xlane.xlu0 %153
    %v155 = vadd.f32 %v118, %v119
    %156 = vadd.xlane.f32.xlu0 %v155
    %v157 = vpop.xlane.xlu0 %156
    %v158 = vadd.f32 %v120, %v121
    %159 = vadd.xlane.f32.xlu0 %v158
    %v160 = vpop.xlane.xlu0 %159
    %v161 = vadd.f32 %v122, %v123
    %162 = vadd.xlane.f32.xlu0 %v161
    %v163 = vpop.xlane.xlu0 %162
    %v164 = vadd.f32 %v124, %v125
    %165 = vadd.xlane.f32.xlu0 %v164
    %v166 = vpop.xlane.xlu0 %165
    %v167 = vadd.f32 %v126, %v127
    %168 = vadd.xlane.f32.xlu0 %v167
    %v169 = vpop.xlane.xlu0 %168
    %v170 = vadd.f32 %v128, %v129
    %171 = vadd.xlane.f32.xlu0 %v170
    %v172 = vpop.xlane.xlu0 %171
    %v173 = vadd.f32 %v130, %v131
    %174 = vadd.xlane.f32.xlu0 %v173
    %v175 = vpop.xlane.xlu0 %174
    %v176 = vadd.f32 %v132, %v133
    %177 = vadd.xlane.f32.xlu0 %v176
    %v178 = vpop.xlane.xlu0 %177
    %v179 = vadd.f32 %v134, %v135
    %180 = vadd.xlane.f32.xlu0 %v179
    %v181 = vpop.xlane.xlu0 %180
    %v182 = vadd.f32 %v136, %v137
    %183 = vadd.xlane.f32.xlu0 %v182
    %v184 = vpop.xlane.xlu0 %183
    %v185 = vadd.f32 %v138, %v139
    %186 = vadd.xlane.f32.xlu0 %v185
    %v187 = vpop.xlane.xlu0 %186
    %v188 = vadd.f32 %v142, 0.0
    %v189 = vadd.f32 %v145, 0.0
    %v190 = vadd.f32 %v148, 0.0
    %v191 = vadd.f32 %v151, 0.0
    %v192 = vadd.f32 %v154, 0.0
    %v193 = vadd.f32 %v157, 0.0
    %v194 = vadd.f32 %v160, 0.0
    %v195 = vadd.f32 %v163, 0.0
    %v196 = vadd.f32 %v166, 0.0
    %v197 = vadd.f32 %v169, 0.0
    %v198 = vadd.f32 %v172, 0.0
    %v199 = vadd.f32 %v175, 0.0
    %v200 = vadd.f32 %v178, 0.0
    %v201 = vadd.f32 %v181, 0.0
    %v202 = vadd.f32 %v184, 0.0
    %v203 = vadd.f32 %v187, 0.0
    %v204 = vmul.f32 %v44, %v44
    %v205 = vmul.f32 %v45, %v45
    %v206 = vmul.f32 %v46, %v46
    %v207 = vmul.f32 %v47, %v47
    %v208 = vmul.f32 %v48, %v48
    %v209 = vmul.f32 %v49, %v49
    %v210 = vmul.f32 %v50, %v50
    %v211 = vmul.f32 %v51, %v51
    %v212 = vmul.f32 %v52, %v52
    %v213 = vmul.f32 %v53, %v53
    %v214 = vmul.f32 %v54, %v54
    %v215 = vmul.f32 %v55, %v55
    %v216 = vmul.f32 %v56, %v56
    %v217 = vmul.f32 %v57, %v57
    %v218 = vmul.f32 %v58, %v58
    %v219 = vmul.f32 %v59, %v59
    %v220 = vmul.f32 %v60, %v60
    %v221 = vmul.f32 %v61, %v61
    %v222 = vmul.f32 %v62, %v62
    %v223 = vmul.f32 %v63, %v63
    %v224 = vmul.f32 %v64, %v64
    %v225 = vmul.f32 %v65, %v65
    %v226 = vmul.f32 %v66, %v66
    %v227 = vmul.f32 %v67, %v67
    %v228 = vmul.f32 %v68, %v68
    %v229 = vmul.f32 %v69, %v69
    %v230 = vmul.f32 %v70, %v70
    %v231 = vmul.f32 %v71, %v71
    %v232 = vmul.f32 %v72, %v72
    %v233 = vmul.f32 %v73, %v73
    %v234 = vmul.f32 %v74, %v74
    %v235 = vmul.f32 %v75, %v75
    %v236 = vadd.f32 %v204, %v205
    %237 = vadd.xlane.f32.xlu0 %v236
    %v238 = vpop.xlane.xlu0 %237
    %v239 = vadd.f32 %v206, %v207
    %240 = vadd.xlane.f32.xlu0 %v239
    %v241 = vpop.xlane.xlu0 %240
    %v242 = vadd.f32 %v208, %v209
    %243 = vadd.xlane.f32.xlu0 %v242
    %v244 = vpop.xlane.xlu0 %243
    %v245 = vadd.f32 %v210, %v211
    %246 = vadd.xlane.f32.xlu0 %v245
    %v247 = vpop.xlane.xlu0 %246
    %v248 = vadd.f32 %v212, %v213
    %249 = vadd.xlane.f32.xlu0 %v248
    %v250 = vpop.xlane.xlu0 %249
    %v251 = vadd.f32 %v214, %v215
    %252 = vadd.xlane.f32.xlu0 %v251
    %v253 = vpop.xlane.xlu0 %252
    %v254 = vadd.f32 %v216, %v217
    %255 = vadd.xlane.f32.xlu0 %v254
    %v256 = vpop.xlane.xlu0 %255
    %v257 = vadd.f32 %v218, %v219
    %258 = vadd.xlane.f32.xlu0 %v257
    %v259 = vpop.xlane.xlu0 %258
    %v260 = vadd.f32 %v220, %v221
    %261 = vadd.xlane.f32.xlu0 %v260
    %v262 = vpop.xlane.xlu0 %261
    %v263 = vadd.f32 %v222, %v223
    %264 = vadd.xlane.f32.xlu0 %v263
    %v265 = vpop.xlane.xlu0 %264
    %v266 = vadd.f32 %v224, %v225
    %267 = vadd.xlane.f32.xlu0 %v266
    %v268 = vpop.xlane.xlu0 %267
    %v269 = vadd.f32 %v226, %v227
    %270 = vadd.xlane.f32.xlu0 %v269
    %v271 = vpop.xlane.xlu0 %270
    %v272 = vadd.f32 %v228, %v229
    %273 = vadd.xlane.f32.xlu0 %v272
    %v274 = vpop.xlane.xlu0 %273
    %v275 = vadd.f32 %v230, %v231
    %276 = vadd.xlane.f32.xlu0 %v275
    %v277 = vpop.xlane.xlu0 %276
    %v278 = vadd.f32 %v232, %v233
    %279 = vadd.xlane.f32.xlu0 %v278
    %v280 = vpop.xlane.xlu0 %279
    %v281 = vadd.f32 %v234, %v235
    %282 = vadd.xlane.f32.xlu0 %v281
    %v283 = vpop.xlane.xlu0 %282
    %v284 = vadd.f32 %v238, 0.0
    %v285 = vadd.f32 %v241, 0.0
    %v286 = vadd.f32 %v244, 0.0
    %v287 = vadd.f32 %v247, 0.0
    %v288 = vadd.f32 %v250, 0.0
    %v289 = vadd.f32 %v253, 0.0
    %v290 = vadd.f32 %v256, 0.0
    %v291 = vadd.f32 %v259, 0.0
    %v292 = vadd.f32 %v262, 0.0
    %v293 = vadd.f32 %v265, 0.0
    %v294 = vadd.f32 %v268, 0.0
    %v295 = vadd.f32 %v271, 0.0
    %v296 = vadd.f32 %v274, 0.0
    %v297 = vadd.f32 %v277, 0.0
    %v298 = vadd.f32 %v280, 0.0
    %v299 = vadd.f32 %v283, 0.0
    %v300 = vmul.f32 %v76, %v76
    %v301 = vmul.f32 %v77, %v77
    %v302 = vmul.f32 %v78, %v78
    %v303 = vmul.f32 %v79, %v79
    %v304 = vmul.f32 %v80, %v80
    %v305 = vmul.f32 %v81, %v81
    %v306 = vmul.f32 %v82, %v82
    %v307 = vmul.f32 %v83, %v83
    %v308 = vmul.f32 %v84, %v84
    %v309 = vmul.f32 %v85, %v85
    %v310 = vmul.f32 %v86, %v86
    %v311 = vmul.f32 %v87, %v87
    %v312 = vmul.f32 %v88, %v88
    %v313 = vmul.f32 %v89, %v89
    %v314 = vmul.f32 %v90, %v90
    %v315 = vmul.f32 %v91, %v91
    %v316 = vmul.f32 %v92, %v92
    %v317 = vmul.f32 %v93, %v93
    %v318 = vmul.f32 %v94, %v94
    %v319 = vmul.f32 %v95, %v95
    %v320 = vmul.f32 %v96, %v96
    %v321 = vmul.f32 %v97, %v97
    %v322 = vmul.f32 %v98, %v98
    %v323 = vmul.f32 %v99, %v99
    %v324 = vmul.f32 %v100, %v100
    %v325 = vmul.f32 %v101, %v101
    %v326 = vmul.f32 %v102, %v102
    %v327 = vmul.f32 %v103, %v103
    %v328 = vmul.f32 %v104, %v104
    %v329 = vmul.f32 %v105, %v105
    %v330 = vmul.f32 %v106, %v106
    %v331 = vmul.f32 %v107, %v107
    %v332 = vadd.f32 %v300, %v301
    %333 = vadd.xlane.f32.xlu0 %v332
    %v334 = vpop.xlane.xlu0 %333
    %v335 = vadd.f32 %v302, %v303
    %336 = vadd.xlane.f32.xlu0 %v335
    %v337 = vpop.xlane.xlu0 %336
    %v338 = vadd.f32 %v304, %v305
    %339 = vadd.xlane.f32.xlu0 %v338
    %v340 = vpop.xlane.xlu0 %339
    %v341 = vadd.f32 %v306, %v307
    %342 = vadd.xlane.f32.xlu0 %v341
    %v343 = vpop.xlane.xlu0 %342
    %v344 = vadd.f32 %v308, %v309
    %345 = vadd.xlane.f32.xlu0 %v344
    %v346 = vpop.xlane.xlu0 %345
    %v347 = vadd.f32 %v310, %v311
    %348 = vadd.xlane.f32.xlu0 %v347
    %v349 = vpop.xlane.xlu0 %348
    %v350 = vadd.f32 %v312, %v313
    %351 = vadd.xlane.f32.xlu0 %v350
    %v352 = vpop.xlane.xlu0 %351
    %v353 = vadd.f32 %v314, %v315
    %354 = vadd.xlane.f32.xlu0 %v353
    %v355 = vpop.xlane.xlu0 %354
    %v356 = vadd.f32 %v316, %v317
    %357 = vadd.xlane.f32.xlu0 %v356
    %v358 = vpop.xlane.xlu0 %357
    %v359 = vadd.f32 %v318, %v319
    %360 = vadd.xlane.f32.xlu0 %v359
    %v361 = vpop.xlane.xlu0 %360
    %v362 = vadd.f32 %v320, %v321
    %363 = vadd.xlane.f32.xlu0 %v362
    %v364 = vpop.xlane.xlu0 %363
    %v365 = vadd.f32 %v322, %v323
    %366 = vadd.xlane.f32.xlu0 %v365
    %v367 = vpop.xlane.xlu0 %366
    %v368 = vadd.f32 %v324, %v325
    %369 = vadd.xlane.f32.xlu0 %v368
    %v370 = vpop.xlane.xlu0 %369
    %v371 = vadd.f32 %v326, %v327
    %372 = vadd.xlane.f32.xlu0 %v371
    %v373 = vpop.xlane.xlu0 %372
    %v374 = vadd.f32 %v328, %v329
    %375 = vadd.xlane.f32.xlu0 %v374
    %v376 = vpop.xlane.xlu0 %375
    %v377 = vadd.f32 %v330, %v331
    %378 = vadd.xlane.f32.xlu0 %v377
    %v379 = vpop.xlane.xlu0 %378
    %v380 = vadd.f32 %v334, 0.0
    %v381 = vadd.f32 %v337, 0.0
    %v382 = vadd.f32 %v340, 0.0
    %v383 = vadd.f32 %v343, 0.0
    %v384 = vadd.f32 %v346, 0.0
    %v385 = vadd.f32 %v349, 0.0
    %v386 = vadd.f32 %v352, 0.0
    %v387 = vadd.f32 %v355, 0.0
    %v388 = vadd.f32 %v358, 0.0
    %v389 = vadd.f32 %v361, 0.0
    %v390 = vadd.f32 %v364, 0.0
    %v391 = vadd.f32 %v367, 0.0
    %v392 = vadd.f32 %v370, 0.0
    %v393 = vadd.f32 %v373, 0.0
    %v394 = vadd.f32 %v376, 0.0
    %v395 = vadd.f32 %v379, 0.0
    %v396 = vmul.f32 %v284, %v380
    %v397 = vmul.f32 %v285, %v381
    %v398 = vmul.f32 %v286, %v382
    %v399 = vmul.f32 %v287, %v383
    %v400 = vmul.f32 %v288, %v384
    %v401 = vmul.f32 %v289, %v385
    %v402 = vmul.f32 %v290, %v386
    %v403 = vmul.f32 %v291, %v387
    %v404 = vmul.f32 %v292, %v388
    %v405 = vmul.f32 %v293, %v389
    %v406 = vmul.f32 %v294, %v390
    %v407 = vmul.f32 %v295, %v391
    %v408 = vmul.f32 %v296, %v392
    %v409 = vmul.f32 %v297, %v393
    %v410 = vmul.f32 %v298, %v394
    %v411 = vmul.f32 %v299, %v395
    %v412 = vmax.f32 %v396, 1e-16
    %v413 = vmax.f32 %v397, 1e-16
    %v414 = vmax.f32 %v398, 1e-16
    %v415 = vmax.f32 %v399, 1e-16
    %v416 = vmax.f32 %v400, 1e-16
    %v417 = vmax.f32 %v401, 1e-16
    %v418 = vmax.f32 %v402, 1e-16
    %v419 = vmax.f32 %v403, 1e-16
    %v420 = vmax.f32 %v404, 1e-16
    %v421 = vmax.f32 %v405, 1e-16
    %v422 = vmax.f32 %v406, 1e-16
    %v423 = vmax.f32 %v407, 1e-16
    %v424 = vmax.f32 %v408, 1e-16
    %v425 = vmax.f32 %v409, 1e-16
    %v426 = vmax.f32 %v410, 1e-16
    %v427 = vmax.f32 %v411, 1e-16
    %v428 = vrsqrt.pop %v412
    %v429 = vmul.f32 %v428, %v412
    %v430 = vmul.f32 %v429, %v428
    %v431 = vmul.f32 0.5, %v430
    %v432 = vsub.f32 1.5, %v431
    %v433 = vmul.f32 %v428, %v432
    %vm434 = vweird.f32 %v412
    %vm435 = vweird.f32 %v428
    %vm436 = vmor %vm434, %vm435
    %v437 = vsel %vm436, %v428, %v433
    %v438 = vrsqrt.pop %v413
    %v439 = vmul.f32 %v438, %v413
    %v440 = vmul.f32 %v439, %v438
    %v441 = vmul.f32 0.5, %v440
    %v442 = vsub.f32 1.5, %v441
    %v443 = vmul.f32 %v438, %v442
    %vm444 = vweird.f32 %v413
    %vm445 = vweird.f32 %v438
    %vm446 = vmor %vm444, %vm445
    %v447 = vsel %vm446, %v438, %v443
    %v448 = vrsqrt.pop %v414
    %v449 = vmul.f32 %v448, %v414
    %v450 = vmul.f32 %v449, %v448
    %v451 = vmul.f32 0.5, %v450
    %v452 = vsub.f32 1.5, %v451
    %v453 = vmul.f32 %v448, %v452
    %vm454 = vweird.f32 %v414
    %vm455 = vweird.f32 %v448
    %vm456 = vmor %vm454, %vm455
    %v457 = vsel %vm456, %v448, %v453
    %v458 = vrsqrt.pop %v415
    %v459 = vmul.f32 %v458, %v415
    %v460 = vmul.f32 %v459, %v458
    %v461 = vmul.f32 0.5, %v460
    %v462 = vsub.f32 1.5, %v461
    %v463 = vmul.f32 %v458, %v462
    %vm464 = vweird.f32 %v415
    %vm465 = vweird.f32 %v458
    %vm466 = vmor %vm464, %vm465
    %v467 = vsel %vm466, %v458, %v463
    %v468 = vrsqrt.pop %v416
    %v469 = vmul.f32 %v468, %v416
    %v470 = vmul.f32 %v469, %v468
    %v471 = vmul.f32 0.5, %v470
    %v472 = vsub.f32 1.5, %v471
    %v473 = vmul.f32 %v468, %v472
    %vm474 = vweird.f32 %v416
    %vm475 = vweird.f32 %v468
    %vm476 = vmor %vm474, %vm475
    %v477 = vsel %vm476, %v468, %v473
    %v478 = vrsqrt.pop %v417
    %v479 = vmul.f32 %v478, %v417
    %v480 = vmul.f32 %v479, %v478
    %v481 = vmul.f32 0.5, %v480
    %v482 = vsub.f32 1.5, %v481
    %v483 = vmul.f32 %v478, %v482
    %vm484 = vweird.f32 %v417
    %vm485 = vweird.f32 %v478
    %vm486 = vmor %vm484, %vm485
    %v487 = vsel %vm486, %v478, %v483
    %v488 = vrsqrt.pop %v418
    %v489 = vmul.f32 %v488, %v418
    %v490 = vmul.f32 %v489, %v488
    %v491 = vmul.f32 0.5, %v490
    %v492 = vsub.f32 1.5, %v491
    %v493 = vmul.f32 %v488, %v492
    %vm494 = vweird.f32 %v418
    %vm495 = vweird.f32 %v488
    %vm496 = vmor %vm494, %vm495
    %v497 = vsel %vm496, %v488, %v493
    %v498 = vrsqrt.pop %v419
    %v499 = vmul.f32 %v498, %v419
    %v500 = vmul.f32 %v499, %v498
    %v501 = vmul.f32 0.5, %v500
    %v502 = vsub.f32 1.5, %v501
    %v503 = vmul.f32 %v498, %v502
    %vm504 = vweird.f32 %v419
    %vm505 = vweird.f32 %v498
    %vm506 = vmor %vm504, %vm505
    %v507 = vsel %vm506, %v498, %v503
    %v508 = vrsqrt.pop %v420
    %v509 = vmul.f32 %v508, %v420
    %v510 = vmul.f32 %v509, %v508
    %v511 = vmul.f32 0.5, %v510
    %v512 = vsub.f32 1.5, %v511
    %v513 = vmul.f32 %v508, %v512
    %vm514 = vweird.f32 %v420
    %vm515 = vweird.f32 %v508
    %vm516 = vmor %vm514, %vm515
    %v517 = vsel %vm516, %v508, %v513
    %v518 = vrsqrt.pop %v421
    %v519 = vmul.f32 %v518, %v421
    %v520 = vmul.f32 %v519, %v518
    %v521 = vmul.f32 0.5, %v520
    %v522 = vsub.f32 1.5, %v521
    %v523 = vmul.f32 %v518, %v522
    %vm524 = vweird.f32 %v421
    %vm525 = vweird.f32 %v518
    %vm526 = vmor %vm524, %vm525
    %v527 = vsel %vm526, %v518, %v523
    %v528 = vrsqrt.pop %v422
    %v529 = vmul.f32 %v528, %v422
    %v530 = vmul.f32 %v529, %v528
    %v531 = vmul.f32 0.5, %v530
    %v532 = vsub.f32 1.5, %v531
    %v533 = vmul.f32 %v528, %v532
    %vm534 = vweird.f32 %v422
    %vm535 = vweird.f32 %v528
    %vm536 = vmor %vm534, %vm535
    %v537 = vsel %vm536, %v528, %v533
    %v538 = vrsqrt.pop %v423
    %v539 = vmul.f32 %v538, %v423
    %v540 = vmul.f32 %v539, %v538
    %v541 = vmul.f32 0.5, %v540
    %v542 = vsub.f32 1.5, %v541
    %v543 = vmul.f32 %v538, %v542
    %vm544 = vweird.f32 %v423
    %vm545 = vweird.f32 %v538
    %vm546 = vmor %vm544, %vm545
    %v547 = vsel %vm546, %v538, %v543
    %v548 = vrsqrt.pop %v424
    %v549 = vmul.f32 %v548, %v424
    %v550 = vmul.f32 %v549, %v548
    %v551 = vmul.f32 0.5, %v550
    %v552 = vsub.f32 1.5, %v551
    %v553 = vmul.f32 %v548, %v552
    %vm554 = vweird.f32 %v424
    %vm555 = vweird.f32 %v548
    %vm556 = vmor %vm554, %vm555
    %v557 = vsel %vm556, %v548, %v553
    %v558 = vrsqrt.pop %v425
    %v559 = vmul.f32 %v558, %v425
    %v560 = vmul.f32 %v559, %v558
    %v561 = vmul.f32 0.5, %v560
    %v562 = vsub.f32 1.5, %v561
    %v563 = vmul.f32 %v558, %v562
    %vm564 = vweird.f32 %v425
    %vm565 = vweird.f32 %v558
    %vm566 = vmor %vm564, %vm565
    %v567 = vsel %vm566, %v558, %v563
    %v568 = vrsqrt.pop %v426
    %v569 = vmul.f32 %v568, %v426
    %v570 = vmul.f32 %v569, %v568
    %v571 = vmul.f32 0.5, %v570
    %v572 = vsub.f32 1.5, %v571
    %v573 = vmul.f32 %v568, %v572
    %vm574 = vweird.f32 %v426
    %vm575 = vweird.f32 %v568
    %vm576 = vmor %vm574, %vm575
    %v577 = vsel %vm576, %v568, %v573
    %v578 = vrsqrt.pop %v427
    %v579 = vmul.f32 %v578, %v427
    %v580 = vmul.f32 %v579, %v578
    %v581 = vmul.f32 0.5, %v580
    %v582 = vsub.f32 1.5, %v581
    %v583 = vmul.f32 %v578, %v582
    %vm584 = vweird.f32 %v427
    %vm585 = vweird.f32 %v578
    %vm586 = vmor %vm584, %vm585
    %v587 = vsel %vm586, %v578, %v583
    %v588 = vmul.f32 %v188, %v437
    %v589 = vmul.f32 %v189, %v447
    %v590 = vmul.f32 %v190, %v457
    %v591 = vmul.f32 %v191, %v467
    %v592 = vmul.f32 %v192, %v477
    %v593 = vmul.f32 %v193, %v487
    %v594 = vmul.f32 %v194, %v497
    %v595 = vmul.f32 %v195, %v507
    %v596 = vmul.f32 %v196, %v517
    %v597 = vmul.f32 %v197, %v527
    %v598 = vmul.f32 %v198, %v537
    %v599 = vmul.f32 %v199, %v547
    %v600 = vmul.f32 %v200, %v557
    %v601 = vmul.f32 %v201, %v567
    %v602 = vmul.f32 %v202, %v577
    %v603 = vmul.f32 %v203, %v587
    %vm604 = vcmask 7168
    %v605 = vsel %vm604, %v588, 0.0
    %v606 = vsel %vm604, %v589, 0.0
    %v607 = vadd.f32 %v605, %v606
    %v608 = vsel %vm604, %v590, 0.0
    %v609 = vadd.f32 %v607, %v608
    %v610 = vsel %vm604, %v591, 0.0
    %v611 = vadd.f32 %v609, %v610
    %v612 = vsel %vm604, %v592, 0.0
    %v613 = vadd.f32 %v611, %v612
    %v614 = vsel %vm604, %v593, 0.0
    %v615 = vadd.f32 %v613, %v614
    %v616 = vsel %vm604, %v594, 0.0
    %v617 = vadd.f32 %v615, %v616
    %v618 = vsel %vm604, %v595, 0.0
    %v619 = vadd.f32 %v617, %v618
    %v620 = vsel %vm604, %v596, 0.0
    %v621 = vadd.f32 %v619, %v620
    %v622 = vsel %vm604, %v597, 0.0
    %v623 = vadd.f32 %v621, %v622
    %v624 = vsel %vm604, %v598, 0.0
    %v625 = vadd.f32 %v623, %v624
    %v626 = vsel %vm604, %v599, 0.0
    %v627 = vadd.f32 %v625, %v626
    %v628 = vsel %vm604, %v600, 0.0
    %v629 = vadd.f32 %v627, %v628
    %v630 = vsel %vm604, %v601, 0.0
    %v631 = vadd.f32 %v629, %v630
    %v632 = vsel %vm604, %v602, 0.0
    %v633 = vadd.f32 %v631, %v632
    %v634 = vsel %vm604, %v603, 0.0
    %v635 = vadd.f32 %v633, %v634
    %636 = vadd.xlane.f32.xlu0 %v635
    %v637 = vpop.xlane.xlu0 %636
    %v638 = vrot.slane %v637, 4
    %v639 = vadd.f32 %v637, %v638
    %v640 = vrot.slane %v639, 2
    %v641 = vadd.f32 %v639, %v640
    %v642 = vrot.slane %v641, 1
    %v643 = vadd.f32 %v641, %v642
    %s644 = vtos %v643
    %v645 = vstv %s644
    %646 = vst [vmem:[#allocation7] sm:$0xff] %v645
    // Predicated region
    $region18: #{tpu_custom_call.1} parent=1 // pred_check
      _
    $region19: #{tpu_custom_call.1} parent=1 // pred_check_branch
      %648 = sbr.rel (0) target = $region21
    $region20: #{tpu_custom_call.1} parent=1 // pred_region
      %650 = vsyncadd [#allocation4], 0
      %s652 = sshll.u32 [#allocation7], 4
      %s653 = int_to_ptr.vmem [resolvable:$true] %s652
      %s654 = sshll.u32 %s2, 4
      %s655 = int_to_ptr.hbm [resolvable:$true] %s654
      %657 = dma.vmem_to_hbm [thread:$0]  %s653, 128, %s655, [#allocation4]
    $region21: #{tpu_custom_call.1} parent=1 // pred_fallthru
      _
    // Predicated region
    $region22: #{tpu_custom_call.1} parent=1 // pred_check
      _
    $region23: #{tpu_custom_call.1} parent=1 // pred_check_branch
      %659 = sbr.rel (0) target = $region25
    $region24: #{tpu_custom_call.1} parent=1 // pred_region
      %661 = dma.done [#allocation4], 128
    $region25: #{tpu_custom_call.1} parent=1 // pred_fallthru
      _
    %662 = vsyncpa [#allocation3], 1
    %663 = vsyncpa [#allocation6], 1
    %664 = vsyncpa [#allocation4], 1

</llo_original>
